<compile_context>
chip_gen: v5e
topology: v5e:2x2
jax: 0.10.0
libtpu: 0.0.40
codegen_flags: <defaults>
</compile_context>

<pallas_src>
import math
from functools import partial

import jax
import jax.numpy as jnp
from jax.experimental import pallas as pl
from jax.experimental.pallas import tpu as pltpu


def _build_pe(d_model: int, max_len: int = 1000) -> jnp.ndarray:
    """Deterministic buffer construction, identical to the PyTorch __init__."""
    position = jnp.arange(0, max_len, dtype=jnp.float32)[:, None]          # (max_len, 1)
    div_term = jnp.exp(
        jnp.arange(0, d_model, 2, dtype=jnp.float32)
        * (-math.log(10000.0) / d_model)
    )                                                                       # (d_model/2,)
    angles = position * div_term                                            # (max_len, d_model/2)
    pe = jnp.zeros((max_len, d_model), dtype=jnp.float32)
    pe = pe.at[:, 0::2].set(jnp.sin(angles))
    pe = pe.at[:, 1::2].set(jnp.cos(angles))
    # unsqueeze(0).transpose(0, 1) -> (max_len, 1, d_model)
    return pe[:, None, :]


def _add_pe_kernel(x_ref, pe_ref, o_ref, *, batch: int):
    # x_ref / o_ref: (ts, B*D) lane-collapsed tiles; pe_ref: (ts, D).
    pe = pe_ref[...]
    if batch > 1:
        # Repeat pe along lanes: element [t, b*D + d] == pe[t, d] -- exactly the
        # broadcast-over-batch of the (S, B, D) view, done in VMEM under DMA.
        pe = jnp.tile(pe, (1, batch))
    o_ref[...] = x_ref[...].astype(o_ref.dtype) + pe.astype(o_ref.dtype)


def _choose_seq_tile(s: int, row_bytes: int, itemsize: int,
                     target_tile_bytes: int = 2 << 20) -> int:
    """Seq (sublane) tile sized strictly by bytes (~2 MiB per x/out tile so
    double-buffered x + pe + out stays inside v5e's 16 MiB default scoped VMEM),
    rounded to the dtype's sublane packing, preferring a tile that divides S so
    the trailing tile isn't a masked partial store."""
    packing = max(8, 32 // max(1, itemsize))        # f32 -> 8, bf16 -> 16, int8 -> 32
    rows = max(packing, target_tile_bytes // max(1, row_bytes))
    rows = (rows // packing) * packing
    if s <= rows:
        return s                                    # full-extent block is always legal
    # Prefer an evenly-dividing tile (avoids a partial trailing tile), but don't
    # shrink below half the byte-budget tile.
    lo = max(packing, (rows // 2 // packing) * packing)
    for cand in range(rows, lo - 1, -packing):
        if s % cand == 0:
            return cand
    return rows


def positional_encoding_forward(x: jnp.ndarray, pe: jnp.ndarray,
                                seq_tile: int | None = None) -> jnp.ndarray:
    """x: (seq_len, batch, d_model); pe: (max_len, 1, d_model). Returns x + pe[:S]."""
    s, b, d = x.shape
    max_len = pe.shape[0]
    assert s <= max_len, f"seq_len={s} exceeds PE buffer max_len={max_len}"

    # Match PyTorch type promotion (e.g. half + float32 buffer -> float32).
    out_dtype = jnp.promote_types(x.dtype, pe.dtype)

    # Free row-major view: collapse (B, D) into lanes. No transpose, no copy.
    x2 = x.reshape(s, b * d)

    ts = (seq_tile if seq_tile is not None
          else _choose_seq_tile(s, b * d * x.dtype.itemsize, x.dtype.itemsize))
    grid = (pl.cdiv(s, ts),)

    out2 = pl.pallas_call(
        partial(_add_pe_kernel, batch=b),
        out_shape=jax.ShapeDtypeStruct((s, b * d), out_dtype),
        grid=grid,
        in_specs=[
            # x: one (ts, B*D) tile per seq-tile grid point.
            pl.BlockSpec((ts, b * d), lambda i: (i, 0)),
            # pe: whole (max_len, 1, D) buffer passed untouched; unit dim squeezed,
            # rows selected by the seq-tile index.
            pl.BlockSpec((ts, None, d), lambda i: (i, 0, 0)),
        ],
        out_specs=pl.BlockSpec((ts, b * d), lambda i: (i, 0)),
        compiler_params=pltpu.CompilerParams(
            dimension_semantics=("parallel",),
        ),
    )(x2, pe)

    return out2.reshape(s, b, d)


if __name__ == "__main__":
    d_model = 32
    seq_len = 8
    batch = 2
    max_len = 1000

    key = jax.random.PRNGKey(0)
    x = jax.random.normal(key, (seq_len, batch, d_model), dtype=jnp.float32)
    pe = _build_pe(d_model, max_len)

    # Small-shape check (matches the module's expected toy sizes).
    out = jax.block_until_ready(positional_encoding_forward(x, pe))
    ref = x + pe[:seq_len, :, :]
    assert out.shape == (seq_len, batch, d_model)
    assert out.dtype == ref.dtype
    assert jnp.allclose(out, ref, atol=1e-6), "mismatch vs reference (small)"

    # Multi-tile check: exercises the seq-tiled grid, batch broadcast inside the
    # kernel, and a masked partial trailing seq tile (1000 rows, 256-row tile).
    s2, b2 = 1000, 3
    x_big = jax.random.normal(jax.random.PRNGKey(1), (s2, b2, d_model), dtype=jnp.float32)
    out_big = jax.block_until_ready(positional_encoding_forward(x_big, pe, seq_tile=256))
    ref_big = x_big + pe[:s2, :, :]
    assert jnp.allclose(out_big, ref_big, atol=1e-6), "mismatch vs reference (tiled)"

    # bf16 input promotes to f32, matching torch half + float32 buffer promotion.
    xb = x.astype(jnp.bfloat16)
    out_b = jax.block_until_ready(positional_encoding_forward(xb, pe))
    ref_b = xb.astype(jnp.float32) + pe[:seq_len, :, :]
    assert out_b.dtype == jnp.float32
    assert jnp.allclose(out_b, ref_b, atol=1e-6), "mismatch vs reference (bf16 promote)"

    print("KERNEL_OK")
</pallas_src>

<mosaic_0001>
module attributes {stable_mosaic.version = 11 : i64} {
  func.func @_add_pe_kernel(%arg0: i32, %arg1: memref<8x64xf32, #tpu.memory_space<vmem>>, %arg2: memref<8x1x32xf32, #tpu.memory_space<vmem>>, %arg3: memref<8x64xf32, #tpu.memory_space<vmem>>) attributes {dimension_semantics = [#tpu.dimension_semantics<parallel>], iteration_bounds = array<i64: 1>, scalar_prefetch = 0 : i64, scratch_operands = 0 : i64, tpu.core_type = #tpu.core_type<tc>, window_params = [{transform_indices = @transform_0, window_bounds = array<i64: 8, 64>}, {transform_indices = @transform_1, window_bounds = array<i64: 8, 1, 32>}, {transform_indices = @transform_2, window_bounds = array<i64: 8, 64>}]} {
    %c0 = arith.constant 0 : index
    %c0_0 = arith.constant 0 : index
    %c0_1 = arith.constant 0 : index
    %0 = vector.load %arg2[%c0, %c0_0, %c0_1] : memref<8x1x32xf32, #tpu.memory_space<vmem>>, vector<8x1x32xf32>
    %1 = vector.shape_cast %0 : vector<8x1x32xf32> to vector<8x32xf32>
    %2 = tpu.concatenate %1, %1 in 1 : vector<8x32xf32>, vector<8x32xf32> -> vector<8x64xf32>
    %c0_2 = arith.constant 0 : index
    %c0_3 = arith.constant 0 : index
    %3 = vector.load %arg1[%c0_2, %c0_3] : memref<8x64xf32, #tpu.memory_space<vmem>>, vector<8x64xf32>
    %4 = arith.addf %3, %2 : vector<8x64xf32>
    %c0_4 = arith.constant 0 : index
    %c0_5 = arith.constant 0 : index
    %5 = vector.load %arg3[%c0_4, %c0_5] : memref<8x64xf32, #tpu.memory_space<vmem>>, vector<8x64xf32>
    tpu.vector_store %arg3[%c0_4, %c0_5], %4 {strides = array<i32>} : memref<8x64xf32, #tpu.memory_space<vmem>>, vector<8x64xf32>,
    return
  }
  func.func @transform_0(%arg0: i32) -> (i32, i32) {
    %c0_i32 = arith.constant 0 : i32
    %c0_i32_0 = arith.constant 0 : i32
    return %arg0, %c0_i32 : i32, i32
  }
  func.func @transform_1(%arg0: i32) -> (i32, i32, i32) {
    %c0_i32 = arith.constant 0 : i32
    %c0_i32_0 = arith.constant 0 : i32
    %c0_i32_1 = arith.constant 0 : i32
    return %arg0, %c0_i32, %c0_i32_0 : i32, i32, i32
  }
  func.func @transform_2(%arg0: i32) -> (i32, i32) {
    %c0_i32 = arith.constant 0 : i32
    %c0_i32_0 = arith.constant 0 : i32
    return %arg0, %c0_i32 : i32, i32
  }
}

</mosaic_0001>

<llo_original>
// kernel: tpu_custom_call.1
$region0: #{tpu_custom_call.1}
  #allocation0 [shape = 'u32[]', space=smem, size = 0x4, offset = 0x4, fixed_abs, tag = 'smem constant byte address 0x4 - core index']
  #allocation1 [shape = 'u32[72,128]{1,0:T(1,128)}', space=vmem, size = 0x9000, scoped, tag = 'internal scratch']
  %s0 = inlined_call_operand.vmem [shape: f32[8,64], index: 0, kind: input, shape index: {}]
  %s1 = inlined_call_operand.vmem [shape: f32[1000,1,32], index: 1, kind: input, shape index: {}]
  %s2 = inlined_call_operand.hbm [shape: f32[8,64], index: 2, kind: output, shape index: {}]
  %s3 = sld [smem:[#allocation0]]
  $region18: #{tpu_custom_call.1} parent=0
    _
  %s5 = ssub.s32 1, %s3
  %s6 = scalar_select 0, %s5, %s3
  $region1: #{tpu_custom_call.1} parent=0
    #allocation2 [shape = 'u8[4096]{0}', space=vmem, size = 0x1000, scoped, tag = 'output window, operand 0, single buffered']
    #allocation3 [shape = 's32[1]{0}', space=sflag, size = 0x4, scoped, tag = 'scoped memory for tpu_custom_call.1']
    %7 = vsyncpa [#allocation3], 0
    // Predicated region
    $region2: #{tpu_custom_call.1} parent=1 // pred_check
      _
    $region3: #{tpu_custom_call.1} parent=1 // pred_check_branch
      %9 = sbr.rel (0) target = $region5
    $region4: #{tpu_custom_call.1} parent=1 // pred_region
      _
    $region5: #{tpu_custom_call.1} parent=1 // pred_fallthru
      _
    // Predicated region
    $region6: #{tpu_custom_call.1} parent=1 // pred_check
      _
    $region7: #{tpu_custom_call.1} parent=1 // pred_check_branch
      %11 = sbr.rel (0) target = $region9
    $region8: #{tpu_custom_call.1} parent=1 // pred_region
      _
    $region9: #{tpu_custom_call.1} parent=1 // pred_fallthru
      _
    %v12 = vld [vmem:[%s1] sm:$0x1]
    %v13 = vld [vmem:[%s1 + $0x1] sm:$0x1]
    %v14 = vld [vmem:[%s1 + $0x2] sm:$0x1]
    %v15 = vld [vmem:[%s1 + $0x3] sm:$0x1]
    %v16 = vld [vmem:[%s1 + $0x4] sm:$0x1]
    %v17 = vld [vmem:[%s1 + $0x5] sm:$0x1]
    %v18 = vld [vmem:[%s1 + $0x6] sm:$0x1]
    %v19 = vld [vmem:[%s1 + $0x7] sm:$0x1]
    %28 = vst [vmem:[#allocation1] ss:$9 sm:$0xff] %v12
    %s29 = scalar_lea.vmem [#allocation1], 1
    %30 = vst [vmem:[%s29] ss:$9 sm:$0xff] %v13
    %s31 = scalar_lea.vmem [#allocation1], 2
    %32 = vst [vmem:[%s31] ss:$9 sm:$0xff] %v14
    %s33 = scalar_lea.vmem [#allocation1], 3
    %34 = vst [vmem:[%s33] ss:$9 sm:$0xff] %v15
    %s35 = scalar_lea.vmem [#allocation1], 4
    %36 = vst [vmem:[%s35] ss:$9 sm:$0xff] %v16
    %s37 = scalar_lea.vmem [#allocation1], 5
    %38 = vst [vmem:[%s37] ss:$9 sm:$0xff] %v17
    %s39 = scalar_lea.vmem [#allocation1], 6
    %40 = vst [vmem:[%s39] ss:$9 sm:$0xff] %v18
    %s41 = scalar_lea.vmem [#allocation1], 7
    %42 = vst [vmem:[%s41] ss:$9 sm:$0xff] %v19
    %v43 = vld [vmem:[#allocation1] sm:$0xff]
    %45 = vst [vmem:[#allocation1] ss:$9 sm:$0xff] %v12
    %s46 = scalar_lea.vmem [#allocation1], 1
    %47 = vst [vmem:[%s46] ss:$9 sm:$0xff] %v13
    %s48 = scalar_lea.vmem [#allocation1], 2
    %49 = vst [vmem:[%s48] ss:$9 sm:$0xff] %v14
    %s50 = scalar_lea.vmem [#allocation1], 3
    %51 = vst [vmem:[%s50] ss:$9 sm:$0xff] %v15
    %s52 = scalar_lea.vmem [#allocation1], 4
    %53 = vst [vmem:[%s52] ss:$9 sm:$0xff] %v16
    %s54 = scalar_lea.vmem [#allocation1], 5
    %55 = vst [vmem:[%s54] ss:$9 sm:$0xff] %v17
    %s56 = scalar_lea.vmem [#allocation1], 6
    %57 = vst [vmem:[%s56] ss:$9 sm:$0xff] %v18
    %s58 = scalar_lea.vmem [#allocation1], 7
    %59 = vst [vmem:[%s58] ss:$9 sm:$0xff] %v19
    %v60 = vld [vmem:[#allocation1] sm:$0xff]
    %61 = vrot.lane.b32.xlu0 %v60, 32
    %v62 = vpop.permute.xlu0 %61
    %vm64 = vcmask 261120
    %v65 = vsel %vm64, %v43, %v62
    %v66 = vld [vmem:[%s0] sm:$0xff]
    %v67 = vadd.f32 %v66, %v65
    %vm68 = vcmask 523264
    %69 = vst.msk [vmem:[#allocation2] sm:$0xff] %vm68, %v67
    // Predicated region
    $region10: #{tpu_custom_call.1} parent=1 // pred_check
      _
    $region11: #{tpu_custom_call.1} parent=1 // pred_check_branch
      %71 = sbr.rel (0) target = $region13
    $region12: #{tpu_custom_call.1} parent=1 // pred_region
      %73 = vsyncadd [#allocation3], 0
      %s75 = sshll.u32 [#allocation2], 4
      %s76 = int_to_ptr.vmem [resolvable:$true] %s75
      %s77 = sshll.u32 %s2, 4
      %s78 = int_to_ptr.hbm [resolvable:$true] %s77
      %80 = dma.vmem_to_hbm [thread:$0]  %s76, 128, %s78, [#allocation3]
    $region13: #{tpu_custom_call.1} parent=1 // pred_fallthru
      _
    // Predicated region
    $region14: #{tpu_custom_call.1} parent=1 // pred_check
      _
    $region15: #{tpu_custom_call.1} parent=1 // pred_check_branch
      %82 = sbr.rel (0) target = $region17
    $region16: #{tpu_custom_call.1} parent=1 // pred_region
      %84 = dma.done [#allocation3], 128
    $region17: #{tpu_custom_call.1} parent=1 // pred_fallthru
      _
    %85 = vsyncpa [#allocation3], 1

</llo_original>
